<compile_context>
chip_gen: v7x
topology: tpu7x:2x2x1
jax: 0.10.0
libtpu: 0.0.40
codegen_flags: <defaults>
</compile_context>

<pallas_src>
import jax
import jax.numpy as jnp
from jax.experimental import pallas as pl
from jax.experimental.pallas import tpu as pltpu


# ----------------------------------------------------------------------------
# Pallas kernel: deform-conv matmul (bf16 MXU, f32 accumulation) + ReLU
# ----------------------------------------------------------------------------
def _align_conv_kernel(cols_ref, wt_ref, o_ref):
    acc = jnp.dot(cols_ref[...], wt_ref[...], preferred_element_type=jnp.float32)
    o_ref[...] = jnp.maximum(acc, 0.0).astype(o_ref.dtype)


def _deform_matmul_relu(cols, weight_mat, *, tm=256):
    """cols: (M, CKK) bf16, weight_mat: (CKK, C_out_pad) bf16 -> (M, C_out_pad) f32.

    tm=256 amortizes per-grid-step overhead and matches the 2x256 MXU on
    v6e/v7x (multiple of 128 is fine on v5e).  With a single bf16 input stream
    the double-buffered VMEM footprint stays tiny even at production CKK, so
    this tile size also fits v7x's 64 MiB VMEM comfortably.
    """
    M, CKK = cols.shape
    C_out_pad = weight_mat.shape[1]
    grid_m = pl.cdiv(M, tm)
    M_pad = grid_m * tm
    if M_pad != M:  # robust tail handling: pad rows (zeros -> relu(0)=0), slice after
        cols = jnp.pad(cols, ((0, M_pad - M), (0, 0)))

    cost = pl.CostEstimate(
        flops=2 * M_pad * CKK * C_out_pad,
        transcendentals=0,
        bytes_accessed=(M_pad * CKK * cols.dtype.itemsize
                        + CKK * C_out_pad * weight_mat.dtype.itemsize
                        + M_pad * C_out_pad * 4),
    )

    out = pl.pallas_call(
        _align_conv_kernel,
        out_shape=jax.ShapeDtypeStruct((M_pad, C_out_pad), jnp.float32),
        grid_spec=pltpu.PrefetchScalarGridSpec(
            num_scalar_prefetch=0,
            grid=(grid_m,),
            in_specs=[pl.BlockSpec((tm, CKK), lambda i: (i, 0)),
                      pl.BlockSpec((CKK, C_out_pad), lambda i: (0, 0))],
            out_specs=pl.BlockSpec((tm, C_out_pad), lambda i: (i, 0)),
        ),
        compiler_params=pltpu.CompilerParams(
            dimension_semantics=("parallel",),          # grid >= 2 -> both v7x TCs
            vmem_limit_bytes=32 * 1024 * 1024,          # explicit headroom (v5e default is 16 MiB)
        ),
        cost_estimate=cost,
    )(cols, weight_mat)
    return out[:M]


# ----------------------------------------------------------------------------
# Plain-JAX glue: AlignConv.get_offset (faithful port of the torch code)
# ----------------------------------------------------------------------------
def get_offset(anchors, featmap_size, stride, kernel_size):
    """anchors: (H*W, 5) -> offset: (2*K*K, H, W), channel order [y0,x0,y1,x1,...]."""
    feat_h, feat_w = featmap_size
    pad = (kernel_size - 1) // 2
    idx = jnp.arange(-pad, pad + 1, dtype=jnp.float32)
    yy, xx = jnp.meshgrid(idx, idx, indexing="ij")
    xx = xx.reshape(-1)
    yy = yy.reshape(-1)
    xc = jnp.arange(0, feat_w, dtype=jnp.float32)
    yc = jnp.arange(0, feat_h, dtype=jnp.float32)
    yc, xc = jnp.meshgrid(yc, xc, indexing="ij")
    xc = xc.reshape(-1)
    yc = yc.reshape(-1)
    x_conv = xc[:, None] + xx
    y_conv = yc[:, None] + yy

    x_ctr, y_ctr, w, h, a = (anchors[:, 0], anchors[:, 1], anchors[:, 2],
                             anchors[:, 3], anchors[:, 4])
    x_ctr, y_ctr, w, h = x_ctr / stride, y_ctr / stride, w / stride, h / stride
    cos, sin = jnp.cos(a), jnp.sin(a)
    dw, dh = w / kernel_size, h / kernel_size
    x = dw[:, None] * xx
    y = dh[:, None] * yy
    xr = cos[:, None] * x - sin[:, None] * y
    yr = sin[:, None] * x + cos[:, None] * y
    x_anchor = xr + x_ctr[:, None]
    y_anchor = yr + y_ctr[:, None]
    offset_x = x_anchor - x_conv
    offset_y = y_anchor - y_conv
    offset = jnp.stack([offset_y, offset_x], axis=-1)            # (HW, KK, 2)
    offset = offset.reshape(anchors.shape[0], -1).T.reshape(-1, feat_h, feat_w)
    return offset                                                # (2*KK, H, W)


# ----------------------------------------------------------------------------
# AlignConv forward: offsets -> deformable sampling prep (JAX) -> Pallas kernel
# ----------------------------------------------------------------------------
def align_conv_forward(x, anchors, weight, *, kernel_size=3, stride=8):
    N, C, H, W = x.shape
    K = kernel_size
    KK = K * K
    pad = (K - 1) // 2

    anchors = anchors.reshape(N, H, W, 5)
    offsets = jnp.stack(
        [get_offset(anchors[i].reshape(-1, 5), (H, W), stride, K) for i in range(N)],
        axis=0)                                                  # (N, 2*KK, H, W)
    offsets = jax.lax.stop_gradient(offsets)                     # .detach()
    off_y = offsets[:, 0::2]                                     # (N, KK, H, W)
    off_x = offsets[:, 1::2]

    # DeformConv2d sampling positions: p = base_grid + offset (stride=1, pad=1).
    kh = (jnp.arange(KK) // K).astype(jnp.float32)
    kw = (jnp.arange(KK) % K).astype(jnp.float32)
    base_y = kh[:, None, None] - pad + jnp.arange(H, dtype=jnp.float32)[None, :, None]
    base_x = kw[:, None, None] - pad + jnp.arange(W, dtype=jnp.float32)[None, None, :]
    p_y = off_y + base_y[None]                                   # (N, KK, H, W)
    p_x = off_x + base_x[None]

    h_low_f = jnp.floor(p_y)
    w_low_f = jnp.floor(p_x)
    h_low = h_low_f.astype(jnp.int32)
    w_low = w_low_f.astype(jnp.int32)
    lh = p_y - h_low_f
    lw = p_x - w_low_f
    hh = 1.0 - lh
    hw = 1.0 - lw

    inside = ((p_y > -1) & (p_x > -1) & (p_y < H) & (p_x < W)).astype(jnp.float32)
    v1_ok = ((h_low >= 0) & (w_low >= 0)).astype(jnp.float32)
    v2_ok = ((h_low >= 0) & (w_low + 1 <= W - 1)).astype(jnp.float32)
    v3_ok = ((h_low + 1 <= H - 1) & (w_low >= 0)).astype(jnp.float32)
    v4_ok = ((h_low + 1 <= H - 1) & (w_low + 1 <= W - 1)).astype(jnp.float32)
    bw1 = hh * hw * v1_ok * inside
    bw2 = hh * lw * v2_ok * inside
    bw3 = lh * hw * v3_ok * inside
    bw4 = lh * lw * v4_ok * inside                               # (N, KK, H, W)

    # Gather the four corner values (clipped indices; masks live in the weights).
    # TODO(synk): for production shapes, fuse this gather into the Pallas kernel
    # (scalar-prefetched linear indices + manual make_async_copy / in-VMEM take)
    # to eliminate the im2col round trip through HBM.
    x_flat = x.reshape(N, C, H * W)

    def gather(hy, wx):
        hyc = jnp.clip(hy, 0, H - 1)
        wxc = jnp.clip(wx, 0, W - 1)
        lin = (hyc * W + wxc).reshape(N, -1)                     # (N, KK*H*W)
        g = jax.vmap(lambda xi, li: xi[:, li])(x_flat, lin)      # (N, C, KK*H*W)
        return g.reshape(N, C, KK, H, W)

    # Bilinear combine in f32 while weights are still (N,1,KK,H,W) vs values
    # (N,C,KK,H,W) -- no replication of the weights across C, and only ONE
    # combined array is handed to the kernel.
    cols = (bw1[:, None] * gather(h_low, w_low)
            + bw2[:, None] * gather(h_low, w_low + 1)
            + bw3[:, None] * gather(h_low + 1, w_low)
            + bw4[:, None] * gather(h_low + 1, w_low + 1))       # (N, C, KK, H, W)

    M = N * H * W
    CKK = C * KK
    # im2col rows (M, C*KK); column ordering c*KK + kh*K + kw matches the
    # DeformConv2d weight reshape below.
    cols_rows = jnp.transpose(cols, (0, 3, 4, 1, 2)).reshape(M, CKK)
    cols_bf = cols_rows.astype(jnp.bfloat16)                     # halve HBM traffic

    C_out = weight.shape[0]
    C_out_pad = max(128, -(-C_out // 128) * 128)                 # lane-dense output
    wmat = weight.reshape(C_out, CKK).T                          # (CKK, C_out)
    wmat_pad = jnp.pad(wmat, ((0, 0), (0, C_out_pad - C_out)))
    wmat_bf = wmat_pad.astype(jnp.bfloat16)

    out_rows = _deform_matmul_relu(cols_bf, wmat_bf)             # (M, C_out_pad) f32
    out = out_rows[:, :C_out].reshape(N, H, W, C_out).transpose(0, 3, 1, 2)  # NCHW
    return out, (cols_rows, cols_bf, wmat_pad, wmat_bf)


# ----------------------------------------------------------------------------
# Main
# ----------------------------------------------------------------------------
if __name__ == "__main__":
    N, C_in, C_out, H, W = 2, 4, 8, 16, 16
    K, STRIDE = 3, 8

    key = jax.random.PRNGKey(0)
    kx, kw_, ka, kb, kc = jax.random.split(key, 5)

    x = jax.random.normal(kx, (N, C_in, H, W), dtype=jnp.float32)

    # DeformConv2d weight (bias=False), normal_init(std=0.01), deterministic.
    weight = 0.01 * jax.random.normal(kw_, (C_out, C_in, K, K), dtype=jnp.float32)

    # Rotated anchors (cx, cy, w, h, angle) per feature location, per image.
    ys, xs = jnp.meshgrid(jnp.arange(H, dtype=jnp.float32),
                          jnp.arange(W, dtype=jnp.float32), indexing="ij")
    cx = (xs + 0.5) * STRIDE
    cy = (ys + 0.5) * STRIDE
    wh = STRIDE * (1.0 + jax.random.uniform(ka, (N, H, W, 2), dtype=jnp.float32) * 3.0)
    ang = (jax.random.uniform(kb, (N, H, W), dtype=jnp.float32) - 0.5) * jnp.pi
    anchors = jnp.stack(
        [jnp.broadcast_to(cx, (N, H, W)),
         jnp.broadcast_to(cy, (N, H, W)),
         wh[..., 0], wh[..., 1], ang], axis=-1).reshape(N * H * W, 5)

    out, (cols_f32, cols_bf, wmat_f32, wmat_bf) = align_conv_forward(
        x, anchors, weight, kernel_size=K, stride=STRIDE)
    out = jax.block_until_ready(out)
    assert out.shape == (N, C_out, H, W)

    # Reference 1: same bf16-rounded operands, f32 accumulation (kernel's exact path).
    ref_rows = jnp.maximum(
        cols_bf.astype(jnp.float32) @ wmat_bf.astype(jnp.float32), 0.0)
    ref = ref_rows[:, :C_out].reshape(N, H, W, C_out).transpose(0, 3, 1, 2)
    assert jnp.allclose(out, ref, atol=1e-4, rtol=1e-4)

    # Reference 2: full-f32 path, loose tolerance (bf16 cast only adds small error).
    ref32_rows = jnp.maximum(cols_f32 @ wmat_f32, 0.0)
    ref32 = ref32_rows[:, :C_out].reshape(N, H, W, C_out).transpose(0, 3, 1, 2)
    assert jnp.allclose(out, ref32, atol=1e-2)

    print("KERNEL_OK")
</pallas_src>

<mosaic_0001>
module attributes {stable_mosaic.version = 11 : i64} {
  func.func @_align_conv_kernel(%arg0: i32, %arg1: memref<256x36xbf16, #tpu.memory_space<vmem>>, %arg2: memref<36x128xbf16, #tpu.memory_space<vmem>>, %arg3: memref<256x128xf32, #tpu.memory_space<vmem>>) attributes {dimension_semantics = [#tpu.dimension_semantics<parallel>], iteration_bounds = array<i64: 2>, scalar_prefetch = 0 : i64, scratch_operands = 0 : i64, tpu.core_type = #tpu.core_type<tc>, window_params = [{transform_indices = @transform_0, window_bounds = array<i64: 256, 36>}, {pipeline_mode = #tpu.pipeline_mode<synchronous>, transform_indices = @transform_1, window_bounds = array<i64: 36, 128>}, {transform_indices = @transform_2, window_bounds = array<i64: 256, 128>}]} {
    %c0 = arith.constant 0 : index
    %c0_0 = arith.constant 0 : index
    %0 = vector.load %arg1[%c0, %c0_0] : memref<256x36xbf16, #tpu.memory_space<vmem>>, vector<256x36xbf16>
    %c0_1 = arith.constant 0 : index
    %c0_2 = arith.constant 0 : index
    %1 = vector.load %arg2[%c0_1, %c0_2] : memref<36x128xbf16, #tpu.memory_space<vmem>>, vector<36x128xbf16>
    %cst = arith.constant dense<0.000000e+00> : vector<256x128xf32>
    %2 = tpu.matmul %0, %1, %cst {dimension_numbers = #tpu.dot_dimension_numbers<[1], [0], [0], [1], [0, 0, 1, 1], [], []>} : vector<256x36xbf16>, vector<36x128xbf16>, vector<256x128xf32> -> vector<256x128xf32>
    %cst_3 = arith.constant 0.000000e+00 : f32
    %3 = vector.broadcast %cst_3 : f32 to vector<256x128xf32>
    %4 = arith.maximumf %2, %3 : vector<256x128xf32>
    %c0_4 = arith.constant 0 : index
    %c0_5 = arith.constant 0 : index
    %5 = vector.load %arg3[%c0_4, %c0_5] : memref<256x128xf32, #tpu.memory_space<vmem>>, vector<256x128xf32>
    tpu.vector_store %arg3[%c0_4, %c0_5], %4 {strides = array<i32>} : memref<256x128xf32, #tpu.memory_space<vmem>>, vector<256x128xf32>,
    return
  }
  func.func @transform_0(%arg0: i32) -> (i32, i32) {
    %c0_i32 = arith.constant 0 : i32
    %c0_i32_0 = arith.constant 0 : i32
    return %arg0, %c0_i32 : i32, i32
  }
  func.func @transform_1(%arg0: i32) -> (i32, i32) {
    %c0_i32 = arith.constant 0 : i32
    %c0_i32_0 = arith.constant 0 : i32
    %c0_i32_1 = arith.constant 0 : i32
    return %c0_i32, %c0_i32_0 : i32, i32
  }
  func.func @transform_2(%arg0: i32) -> (i32, i32) {
    %c0_i32 = arith.constant 0 : i32
    %c0_i32_0 = arith.constant 0 : i32
    return %arg0, %c0_i32 : i32, i32
  }
}

</mosaic_0001>

<llo_original>
// kernel: tpu_custom_call.1
$region0: #{tpu_custom_call.1}
  #allocation0 [shape = 'u32[]', space=smem, size = 0x4, offset = 0x4, fixed_abs, tag = 'smem constant byte address 0x4 - core index']
  #allocation1 [shape = 'u32[144,128]{1,0:T(1,128)}', space=vmem, size = 0x12000, scoped, tag = 'internal scratch']
  %s0 = inlined_call_operand.vmem [shape: bf16[512,36], index: 0, kind: input, shape index: {}]
  %s1 = inlined_call_operand.vmem [shape: bf16[36,128], index: 1, kind: input, shape index: {}]
  %s2 = inlined_call_operand.hbm [shape: f32[512,128], index: 2, kind: output, shape index: {}]
  %s3 = sld [smem:[#allocation0]]
  $region41: #{tpu_custom_call.1} parent=0
    _
  %s5 = ssub.s32 1, %s3
  %s6 = scalar_select 0, %s5, %s3
  $region1: #{tpu_custom_call.1} parent=0
    #allocation2 [shape = 'u8[262144]{0}', space=vmem, size = 0x40000, scoped, tag = 'output window, operand 0']
    #allocation3 [shape = 's32[2]{0}', space=sflag, size = 0x8, scoped, tag = 'scoped memory for tpu_custom_call.1']
    %7 = vsyncpa [#allocation3], 0
    %s8 = scalar_lea.sflag [#allocation3], 1
    %9 = vsyncpa %s8, 0
    loop: start=0, step=1, limit=4
    $region2: #{tpu_custom_call.1} parent=1 // loop_pre_header
      _
    $region3: #{tpu_custom_call.1} parent=1 // loop_header
      %s11 = sphi 0, %s15
      %p12 = scmp.ge.s32.totalorder %s11, 4
      %s21 = sphi 0, %s23
      %s24 = sphi 0, %s21
      %s25 = sphi 0, %s24
      %s41 = sphi 0, %s25
      %s45 = sphi 0, %s45
      %s47 = sphi 0, %s45
      %s48 = sphi 0, %s47
      %s62 = sphi 0, %s48
      %s68 = sphi 0, %s70
      %s71 = sphi 0, %s68
      %s72 = sphi 0, %s71
      %s88 = sphi 0, %s72
    $region4: #{tpu_custom_call.1} parent=1 // loop_header_branch
      %14 = sbr.rel (%p12) target = $region8
    $region5: #{tpu_custom_call.1} parent=1 // loop_body
      %s16 = ssub.s32 %s11, 1
      %s17 = ssub.s32 %s11, 2
      %s18 = sadd.s32 %s11, 1
      %s19 = ssub.s32 %s11, %s18
      %p20 = scmp.eq.s32.totalorder %s19, 0
      %s22 = sadd.s32 %s21, 1
      %s23 = scalar_select %p20, %s21, %s22
      %p26 = pneg %p20
      %p27 = scmp.eq.s32.totalorder %s11, 1
      %p28 = por %p26, %p27
      %p29 = scmp.ne.s32.totalorder %s21, %s24
      %p30 = scmp.eq.s32.totalorder %s11, 0
      %p31 = por %p29, %p30
      %p32 = scmp.ne.s32.totalorder %s21, %s24
      %p33 = scmp.eq.s32.totalorder %s16, 1
      %p34 = por %p32, %p33
      %p35 = scmp.ne.s32.totalorder %s24, %s25
      %p36 = scmp.eq.s32.totalorder %s16, 0
      %p37 = por %p35, %p36
      %p38 = scmp.ne.s32.totalorder %s24, %s25
      %p39 = scmp.eq.s32.totalorder %s17, 1
      %p40 = por %p38, %p39
      %p42 = scmp.ne.s32.totalorder %s25, %s41
      %p43 = scmp.eq.s32.totalorder %s17, 0
      %p44 = por %p42, %p43
      %s46 = sadd.s32 %s45, 1
      %p49 = scmp.eq.s32.totalorder %s11, 1
      %p50 = scmp.ne.s32.totalorder %s45, %s47
      %p51 = scmp.eq.s32.totalorder %s11, 0
      %p52 = por %p50, %p51
      %p53 = scmp.ne.s32.totalorder %s45, %s47
      %p54 = scmp.eq.s32.totalorder %s16, 1
      %p55 = por %p53, %p54
      %p56 = scmp.ne.s32.totalorder %s47, %s48
      %p57 = scmp.eq.s32.totalorder %s16, 0
      %p58 = por %p56, %p57
      %p59 = scmp.ne.s32.totalorder %s47, %s48
      %p60 = scmp.eq.s32.totalorder %s17, 1
      %p61 = por %p59, %p60
      %p63 = scmp.ne.s32.totalorder %s48, %s62
      %p64 = scmp.eq.s32.totalorder %s17, 0
      %p65 = por %p63, %p64
      %s66 = ssub.s32 %s11, %s18
      %p67 = scmp.eq.s32.totalorder %s66, 0
      %s69 = sadd.s32 %s68, 1
      %s70 = scalar_select %p67, %s68, %s69
      %p73 = pneg %p67
      %p74 = scmp.eq.s32.totalorder %s11, 1
      %p75 = por %p73, %p74
      %p76 = scmp.ne.s32.totalorder %s68, %s71
      %p77 = scmp.eq.s32.totalorder %s11, 0
      %p78 = por %p76, %p77
      %p79 = scmp.ne.s32.totalorder %s68, %s71
      %p80 = scmp.eq.s32.totalorder %s16, 1
      %p81 = por %p79, %p80
      %p82 = scmp.ne.s32.totalorder %s71, %s72
      %p83 = scmp.eq.s32.totalorder %s16, 0
      %p84 = por %p82, %p83
      %p85 = scmp.ne.s32.totalorder %s71, %s72
      %p86 = scmp.eq.s32.totalorder %s17, 1
      %p87 = por %p85, %p86
      %p89 = scmp.ne.s32.totalorder %s72, %s88
      %p90 = scmp.eq.s32.totalorder %s17, 0
      %p91 = por %p89, %p90
      %p92 = scmp.le.s32.totalorder 1, %s11
      %p93 = scmp.lt.s32.totalorder %s11, 3
      %p94 = pnand %p92, %p93
      %p95 = pneg %p94
      // Predicated region
      $region9: #{tpu_custom_call.1} parent=5 // pred_check
        _
      $region10: #{tpu_custom_call.1} parent=5 // pred_check_branch
        %97 = sbr.rel (%p94) target = $region12
      $region11: #{tpu_custom_call.1} parent=5 // pred_region
        %s98 = ssub.s32 %s11, 1
        // Predicated region
        $region13: #{tpu_custom_call.1} parent=11 // pred_check
          %p99 = pneg %p58
        $region14: #{tpu_custom_call.1} parent=11 // pred_check_branch
          %101 = sbr.rel (%p99) target = $region16
        $region15: #{tpu_custom_call.1} parent=11 // pred_region
          _
        $region16: #{tpu_custom_call.1} parent=11 // pred_fallthru
          _
      $region12: #{tpu_custom_call.1} parent=5 // pred_fallthru
        _
      %p102 = scmp.lt.s32.totalorder %s11, 2
      // Predicated region
      $region17: #{tpu_custom_call.1} parent=5 // pred_check
        %p103 = pneg %p102
      $region18: #{tpu_custom_call.1} parent=5 // pred_check_branch
        %105 = sbr.rel (%p103) target = $region20
      $region19: #{tpu_custom_call.1} parent=5 // pred_region
        // Predicated region
        $region21: #{tpu_custom_call.1} parent=19 // pred_check
          %p106 = pneg %p31
        $region22: #{tpu_custom_call.1} parent=19 // pred_check_branch
          %108 = sbr.rel (%p106) target = $region24
        $region23: #{tpu_custom_call.1} parent=19 // pred_region
          %s109 = smul.u32 32, %s11
          %p110 = scmp.lt.s32.totalorder %s109, 63
          %s111 = scalar_select %p110, %s109, 63
          %s112 = smul.addr %s111, 4
          %s113 = scalar_lea.vmem %s0, %s112
          %s114 = smul.u32 32, %s11
        $region24: #{tpu_custom_call.1} parent=19 // pred_fallthru
          _
      $region20: #{tpu_custom_call.1} parent=5 // pred_fallthru
        _
      %p115 = scmp.le.s32.totalorder 1, %s11
      %p116 = scmp.lt.s32.totalorder %s11, 3
      %p117 = pnand %p115, %p116
      %p118 = pneg %p117
      // Predicated region
      $region25: #{tpu_custom_call.1} parent=5 // pred_check
        _
      $region26: #{tpu_custom_call.1} parent=5 // pred_check_branch
        %120 = sbr.rel (%p117) target = $region28
      $region27: #{tpu_custom_call.1} parent=5 // pred_region
        %s121 = ssub.s32 %s11, 1
        %s122 = smul.u32 32, %s16
        %p123 = scmp.lt.s32.totalorder %s122, 63
        %s124 = scalar_select %p123, %s122, 63
        %s125 = smul.addr %s124, 4
        %s126 = scalar_lea.vmem %s0, %s125
        %p127 = pneg %p37
        %p128 = pneg %p34
        %p129 = pneg %p58
        %p130 = pneg %p55
        %p131 = pneg %p84
        %p132 = pneg %p81
        %s133 = sand.u32 %s71, 1
        %s134 = scalar_lea.sflag [#allocation3], %s133
        %s135 = sand.u32 %s71, 1
        %s136 = smul.addr %s135, 256
        %s137 = scalar_lea.vmem [#allocation2], %s136
        %s138 = smul.u32 32, %s16
        %p139 = scmp.lt.s32.totalorder %s138, 63
        %s140 = scalar_select %p139, %s138, 63
        %s141 = smul.addr %s140, 4
        %s142 = scalar_lea.vmem %s0, %s141
        %s143 = smul.u32 32, %s16
        %s144 = smul.u32 32, %s16
        %v146 = vld [vmem:[%s142] sm:$0xf]
        %v147 = vld [vmem:[%s142 + $0x4] sm:$0xf]
        %v148 = vld [vmem:[%s142 + $0x8] sm:$0xf]
        %v149 = vld [vmem:[%s142 + $0xc] sm:$0xf]
        %v150 = vld [vmem:[%s142 + $0x10] sm:$0xf]
        %v151 = vld [vmem:[%s142 + $0x14] sm:$0xf]
        %v152 = vld [vmem:[%s142 + $0x18] sm:$0xf]
        %v153 = vld [vmem:[%s142 + $0x1c] sm:$0xf]
        %v154 = vld [vmem:[%s142 + $0x20] sm:$0xf]
        %v155 = vld [vmem:[%s142 + $0x24] sm:$0xf]
        %v156 = vld [vmem:[%s142 + $0x28] sm:$0xf]
        %v157 = vld [vmem:[%s142 + $0x2c] sm:$0xf]
        %v158 = vld [vmem:[%s142 + $0x30] sm:$0xf]
        %v159 = vld [vmem:[%s142 + $0x34] sm:$0xf]
        %v160 = vld [vmem:[%s142 + $0x38] sm:$0xf]
        %v161 = vld [vmem:[%s142 + $0x3c] sm:$0xf]
        %v162 = vld [vmem:[%s142 + $0x40] sm:$0xf]
        %v163 = vld [vmem:[%s142 + $0x44] sm:$0xf]
        %v164 = vld [vmem:[%s142 + $0x48] sm:$0xf]
        %v165 = vld [vmem:[%s142 + $0x4c] sm:$0xf]
        %v166 = vld [vmem:[%s142 + $0x50] sm:$0xf]
        %v167 = vld [vmem:[%s142 + $0x54] sm:$0xf]
        %v168 = vld [vmem:[%s142 + $0x58] sm:$0xf]
        %v169 = vld [vmem:[%s142 + $0x5c] sm:$0xf]
        %v170 = vld [vmem:[%s142 + $0x60] sm:$0xf]
        %v171 = vld [vmem:[%s142 + $0x64] sm:$0xf]
        %v172 = vld [vmem:[%s142 + $0x68] sm:$0xf]
        %v173 = vld [vmem:[%s142 + $0x6c] sm:$0xf]
        %v174 = vld [vmem:[%s142 + $0x70] sm:$0xf]
        %v175 = vld [vmem:[%s142 + $0x74] sm:$0xf]
        %v176 = vld [vmem:[%s142 + $0x78] sm:$0xf]
        %v177 = vld [vmem:[%s142 + $0x7c] sm:$0xf]
        %v178 = vld [vmem:[%s1] sm:$0xf]
        %v179 = vld [vmem:[%s1 + $0x4] sm:$0xf]
        %v180 = vld [vmem:[%s1 + $0x8] sm:$0xf]
        %v181 = vld [vmem:[%s1 + $0xc] sm:$0xf]
        %v182 = vld [vmem:[%s1 + $0x10] sm:$0x3]
        %v215 = vunpack.c.l.b16 %v146
        %v216 = vunpack.c.l.b16 %v147
        %v217 = vunpack.c.l.b16 %v148
        %v218 = vunpack.c.l.b16 %v149
        %v219 = vunpack.c.l.b16 %v150
        %v220 = vunpack.c.l.b16 %v151
        %v221 = vunpack.c.l.b16 %v152
        %v222 = vunpack.c.l.b16 %v153
        %v223 = vunpack.c.l.b16 %v154
        %v224 = vunpack.c.l.b16 %v155
        %v225 = vunpack.c.l.b16 %v156
        %v226 = vunpack.c.l.b16 %v157
        %v227 = vunpack.c.l.b16 %v158
        %v228 = vunpack.c.l.b16 %v159
        %v229 = vunpack.c.l.b16 %v160
        %v230 = vunpack.c.l.b16 %v161
        %v231 = vunpack.c.l.b16 %v162
        %v232 = vunpack.c.l.b16 %v163
        %v233 = vunpack.c.l.b16 %v164
        %v234 = vunpack.c.l.b16 %v165
        %v235 = vunpack.c.l.b16 %v166
        %v236 = vunpack.c.l.b16 %v167
        %v237 = vunpack.c.l.b16 %v168
        %v238 = vunpack.c.l.b16 %v169
        %v239 = vunpack.c.l.b16 %v170
        %v240 = vunpack.c.l.b16 %v171
        %v241 = vunpack.c.l.b16 %v172
        %v242 = vunpack.c.l.b16 %v173
        %v243 = vunpack.c.l.b16 %v174
        %v244 = vunpack.c.l.b16 %v175
        %v245 = vunpack.c.l.b16 %v176
        %v246 = vunpack.c.l.b16 %v177
        %v247 = vpack.c.b16 %v216, %v215
        %v248 = vpack.c.b16 %v218, %v217
        %v249 = vpack.c.b16 %v220, %v219
        %v250 = vpack.c.b16 %v222, %v221
        %v251 = vpack.c.b16 %v224, %v223
        %v252 = vpack.c.b16 %v226, %v225
        %v253 = vpack.c.b16 %v228, %v227
        %v254 = vpack.c.b16 %v230, %v229
        %v255 = vpack.c.b16 %v232, %v231
        %v256 = vpack.c.b16 %v234, %v233
        %v257 = vpack.c.b16 %v236, %v235
        %v258 = vpack.c.b16 %v238, %v237
        %v259 = vpack.c.b16 %v240, %v239
        %v260 = vpack.c.b16 %v242, %v241
        %v261 = vpack.c.b16 %v244, %v243
        %v262 = vpack.c.b16 %v246, %v245
        %v268 = vunpack.c.l.b16 %v178
        %v269 = vunpack.c.l.b16 %v179
        %v270 = vunpack.c.l.b16 %v180
        %v271 = vunpack.c.l.b16 %v181
        %v272 = vunpack.c.l.b16 %v182
        %v273 = vpack.c.b16 %v269, %v268
        %v274 = vpack.c.b16 %v271, %v270
        %v275 = vpack.c.b16 %v272, %v272
        %vm278 = vcmask 293888
        %v280 = vsel %vm278, %v247, 0
        %v283 = vsel %vm278, %v248, 0
        %v286 = vsel %vm278, %v249, 0
        %v289 = vsel %vm278, %v250, 0
        %v292 = vsel %vm278, %v251, 0
        %v295 = vsel %vm278, %v252, 0
        %v298 = vsel %vm278, %v253, 0
        %v301 = vsel %vm278, %v254, 0
        %v304 = vsel %vm278, %v255, 0
        %v307 = vsel %vm278, %v256, 0
        %v310 = vsel %vm278, %v257, 0
        %v313 = vsel %vm278, %v258, 0
        %v316 = vsel %vm278, %v259, 0
        %v319 = vsel %vm278, %v260, 0
        %v322 = vsel %vm278, %v261, 0
        %v325 = vsel %vm278, %v262, 0
        %vm327 = vcmask 1041408
        %v329 = vsel %vm327, %v275, 0
        %331 = vmatprep.subr.bf16.mxu0 0
        %332 = vmatpush1.bf16.msra.mxu0 %v273
        %333 = vmatprep.subr.bf16.mxu0 0
        %334 = vmatpush1.bf16.msra.mxu0 %v274
        %335 = vmatprep.subr.bf16.mxu0 0
        %336 = vmatpush1.bf16.msra.mxu0 %v329
        %337 = vmatprep.subr.bf16.mxu0 0
        %338 = vmatpush1.bf16.msra.mxu0 0
        %339 = vmatprep.subr.bf16.mxu0 0
        %340 = vmatpush1.bf16.msra.mxu0 0
        %341 = vmatprep.subr.bf16.mxu0 0
        %342 = vmatpush1.bf16.msra.mxu0 0
        %343 = vmatprep.subr.bf16.mxu0 0
        %344 = vmatpush1.bf16.msra.mxu0 0
        %345 = vmatprep.subr.bf16.mxu0 0
        %346 = vmatpush1.bf16.msra.mxu0 0
        %347 = vmatprep.subr.bf16.mxu0 0
        %348 = vmatpush1.bf16.msra.mxu0 0
        %349 = vmatprep.subr.bf16.mxu0 0
        %350 = vmatpush1.bf16.msra.mxu0 0
        %351 = vmatprep.subr.bf16.mxu0 0
        %352 = vmatpush1.bf16.msra.mxu0 0
        %353 = vmatprep.subr.bf16.mxu0 0
        %354 = vmatpush1.bf16.msra.mxu0 0
        %355 = vmatprep.subr.bf16.mxu0 0
        %356 = vmatpush1.bf16.msra.mxu0 0
        %357 = vmatprep.subr.bf16.mxu0 0
        %358 = vmatpush1.bf16.msra.mxu0 0
        %359 = vmatprep.subr.bf16.mxu0 0
        %360 = vmatpush1.bf16.msra.mxu0 0
        %361 = vmatprep.subr.bf16.mxu0 0
        %362 = vmatpush1.bf16.msra.mxu0 0
        %363 = vmatprep.mubr.bf16.mxu0 0
        %364 = vmatmul.mubr.bf16.gmra.mrb[0].mxu0 %v280
        %v365 = vpop.f32.mrb[0].mxu0
        %v366 = vadd.f32 0.0, %v365
        %v367 = vpop.f32.mrb[0].mxu0
        %v368 = vpop.f32.mrb[0].mxu0
        %v369 = vadd.f32 0.0, %v368
        %v370 = vpop.f32.mrb[0].mxu0
        %371 = vmatprep.mubr.bf16.mxu0 0
        %372 = vmatmul.mubr.bf16.gmra.mrb[0].mxu0 %v283
        %v373 = vpop.f32.mrb[0].mxu0
        %v374 = vadd.f32 0.0, %v373
        %v375 = vpop.f32.mrb[0].mxu0
        %v376 = vpop.f32.mrb[0].mxu0
        %v377 = vadd.f32 0.0, %v376
        %v378 = vpop.f32.mrb[0].mxu0
        %379 = vmatprep.mubr.bf16.mxu0 0
        %380 = vmatmul.mubr.bf16.gmra.mrb[0].mxu0 %v286
        %v381 = vpop.f32.mrb[0].mxu0
        %v382 = vadd.f32 0.0, %v381
        %v383 = vpop.f32.mrb[0].mxu0
        %v384 = vpop.f32.mrb[0].mxu0
        %v385 = vadd.f32 0.0, %v384
        %v386 = vpop.f32.mrb[0].mxu0
        %387 = vmatprep.mubr.bf16.mxu0 0
        %388 = vmatmul.mubr.bf16.gmra.mrb[0].mxu0 %v289
        %v389 = vpop.f32.mrb[0].mxu0
        %v390 = vadd.f32 0.0, %v389
        %v391 = vpop.f32.mrb[0].mxu0
        %v392 = vpop.f32.mrb[0].mxu0
        %v393 = vadd.f32 0.0, %v392
        %v394 = vpop.f32.mrb[0].mxu0
        %395 = vmatprep.mubr.bf16.mxu0 0
        %396 = vmatmul.mubr.bf16.gmra.mrb[0].mxu0 %v292
        %v397 = vpop.f32.mrb[0].mxu0
        %v398 = vadd.f32 0.0, %v397
        %v399 = vpop.f32.mrb[0].mxu0
        %v400 = vpop.f32.mrb[0].mxu0
        %v401 = vadd.f32 0.0, %v400
        %v402 = vpop.f32.mrb[0].mxu0
        %403 = vmatprep.mubr.bf16.mxu0 0
        %404 = vmatmul.mubr.bf16.gmra.mrb[0].mxu0 %v295
        %v405 = vpop.f32.mrb[0].mxu0
        %v406 = vadd.f32 0.0, %v405
        %v407 = vpop.f32.mrb[0].mxu0
        %v408 = vpop.f32.mrb[0].mxu0
        %v409 = vadd.f32 0.0, %v408
        %v410 = vpop.f32.mrb[0].mxu0
        %411 = vmatprep.mubr.bf16.mxu0 0
        %412 = vmatmul.mubr.bf16.gmra.mrb[0].mxu0 %v298
        %v413 = vpop.f32.mrb[0].mxu0
        %v414 = vadd.f32 0.0, %v413
        %v415 = vpop.f32.mrb[0].mxu0
        %v416 = vpop.f32.mrb[0].mxu0
        %v417 = vadd.f32 0.0, %v416
        %v418 = vpop.f32.mrb[0].mxu0
        %419 = vmatprep.mubr.bf16.mxu0 0
        %420 = vmatmul.mubr.bf16.gmra.mrb[0].mxu0 %v301
        %v421 = vpop.f32.mrb[0].mxu0
        %v422 = vadd.f32 0.0, %v421
        %v423 = vpop.f32.mrb[0].mxu0
        %v424 = vpop.f32.mrb[0].mxu0
        %v425 = vadd.f32 0.0, %v424
        %v426 = vpop.f32.mrb[0].mxu0
        %427 = vmatprep.mubr.bf16.mxu0 0
        %428 = vmatmul.mubr.bf16.gmra.mrb[0].mxu0 %v304
        %v429 = vpop.f32.mrb[0].mxu0
        %v430 = vadd.f32 0.0, %v429
        %v431 = vpop.f32.mrb[0].mxu0
        %v432 = vpop.f32.mrb[0].mxu0
        %v433 = vadd.f32 0.0, %v432
        %v434 = vpop.f32.mrb[0].mxu0
        %435 = vmatprep.mubr.bf16.mxu0 0
        %436 = vmatmul.mubr.bf16.gmra.mrb[0].mxu0 %v307
        %v437 = vpop.f32.mrb[0].mxu0
        %v438 = vadd.f32 0.0, %v437
        %v439 = vpop.f32.mrb[0].mxu0
        %v440 = vpop.f32.mrb[0].mxu0
        %v441 = vadd.f32 0.0, %v440
        %v442 = vpop.f32.mrb[0].mxu0
        %443 = vmatprep.mubr.bf16.mxu0 0
        %444 = vmatmul.mubr.bf16.gmra.mrb[0].mxu0 %v310
        %v445 = vpop.f32.mrb[0].mxu0
        %v446 = vadd.f32 0.0, %v445
        %v447 = vpop.f32.mrb[0].mxu0
        %v448 = vpop.f32.mrb[0].mxu0
        %v449 = vadd.f32 0.0, %v448
        %v450 = vpop.f32.mrb[0].mxu0
        %451 = vmatprep.mubr.bf16.mxu0 0
        %452 = vmatmul.mubr.bf16.gmra.mrb[0].mxu0 %v313
        %v453 = vpop.f32.mrb[0].mxu0
        %v454 = vadd.f32 0.0, %v453
        %v455 = vpop.f32.mrb[0].mxu0
        %v456 = vpop.f32.mrb[0].mxu0
        %v457 = vadd.f32 0.0, %v456
        %v458 = vpop.f32.mrb[0].mxu0
        %459 = vmatprep.mubr.bf16.mxu0 0
        %460 = vmatmul.mubr.bf16.gmra.mrb[0].mxu0 %v316
        %v461 = vpop.f32.mrb[0].mxu0
        %v462 = vadd.f32 0.0, %v461
        %v463 = vpop.f32.mrb[0].mxu0
        %v464 = vpop.f32.mrb[0].mxu0
        %v465 = vadd.f32 0.0, %v464
        %v466 = vpop.f32.mrb[0].mxu0
        %467 = vmatprep.mubr.bf16.mxu0 0
        %468 = vmatmul.mubr.bf16.gmra.mrb[0].mxu0 %v319
        %v469 = vpop.f32.mrb[0].mxu0
        %v470 = vadd.f32 0.0, %v469
        %v471 = vpop.f32.mrb[0].mxu0
        %v472 = vpop.f32.mrb[0].mxu0
        %v473 = vadd.f32 0.0, %v472
        %v474 = vpop.f32.mrb[0].mxu0
        %475 = vmatprep.mubr.bf16.mxu0 0
        %476 = vmatmul.mubr.bf16.gmra.mrb[0].mxu0 %v322
        %v477 = vpop.f32.mrb[0].mxu0
        %v478 = vadd.f32 0.0, %v477
        %v479 = vpop.f32.mrb[0].mxu0
        %v480 = vpop.f32.mrb[0].mxu0
        %v481 = vadd.f32 0.0, %v480
        %v482 = vpop.f32.mrb[0].mxu0
        %483 = vmatprep.mubr.bf16.mxu0 0
        %484 = vmatmul.mubr.bf16.gmra.mrb[0].mxu0 %v325
        %v485 = vpop.f32.mrb[0].mxu0
        %v486 = vadd.f32 0.0, %v485
        %v487 = vpop.f32.mrb[0].mxu0
        %v488 = vpop.f32.mrb[0].mxu0
        %v489 = vadd.f32 0.0, %v488
        %v490 = vpop.f32.mrb[0].mxu0
        %491 = vdwg.mxu0
        %v492 = vmax.f32 %v366, 0.0
        %v493 = vmax.f32 %v369, 0.0
        %v494 = vmax.f32 %v374, 0.0
        %v495 = vmax.f32 %v377, 0.0
        %v496 = vmax.f32 %v382, 0.0
        %v497 = vmax.f32 %v385, 0.0
        %v498 = vmax.f32 %v390, 0.0
        %v499 = vmax.f32 %v393, 0.0
        %v500 = vmax.f32 %v398, 0.0
        %v501 = vmax.f32 %v401, 0.0
        %v502 = vmax.f32 %v406, 0.0
        %v503 = vmax.f32 %v409, 0.0
        %v504 = vmax.f32 %v414, 0.0
        %v505 = vmax.f32 %v417, 0.0
        %v506 = vmax.f32 %v422, 0.0
        %v507 = vmax.f32 %v425, 0.0
        %v508 = vmax.f32 %v430, 0.0
        %v509 = vmax.f32 %v433, 0.0
        %v510 = vmax.f32 %v438, 0.0
        %v511 = vmax.f32 %v441, 0.0
        %v512 = vmax.f32 %v446, 0.0
        %v513 = vmax.f32 %v449, 0.0
        %v514 = vmax.f32 %v454, 0.0
        %v515 = vmax.f32 %v457, 0.0
        %v516 = vmax.f32 %v462, 0.0
        %v517 = vmax.f32 %v465, 0.0
        %v518 = vmax.f32 %v470, 0.0
        %v519 = vmax.f32 %v473, 0.0
        %v520 = vmax.f32 %v478, 0.0
        %v521 = vmax.f32 %v481, 0.0
        %v522 = vmax.f32 %v486, 0.0
        %v523 = vmax.f32 %v489, 0.0
        %524 = vst [vmem:[%s137] sm:$0xff] %v492
        %525 = vst [vmem:[%s137 + $0x8] sm:$0xff] %v493
        %526 = vst [vmem:[%s137 + $0x10] sm:$0xff] %v494
        %527 = vst [vmem:[%s137 + $0x18] sm:$0xff] %v495
        %528 = vst [vmem:[%s137 + $0x20] sm:$0xff] %v496
        %529 = vst [vmem:[%s137 + $0x28] sm:$0xff] %v497
        %530 = vst [vmem:[%s137 + $0x30] sm:$0xff] %v498
        %531 = vst [vmem:[%s137 + $0x38] sm:$0xff] %v499
        %532 = vst [vmem:[%s137 + $0x40] sm:$0xff] %v500
        %533 = vst [vmem:[%s137 + $0x48] sm:$0xff] %v501
        %534 = vst [vmem:[%s137 + $0x50] sm:$0xff] %v502
        %535 = vst [vmem:[%s137 + $0x58] sm:$0xff] %v503
        %536 = vst [vmem:[%s137 + $0x60] sm:$0xff] %v504
        %537 = vst [vmem:[%s137 + $0x68] sm:$0xff] %v505
        %538 = vst [vmem:[%s137 + $0x70] sm:$0xff] %v506
        %539 = vst [vmem:[%s137 + $0x78] sm:$0xff] %v507
        %540 = vst [vmem:[%s137 + $0x80] sm:$0xff] %v508
        %541 = vst [vmem:[%s137 + $0x88] sm:$0xff] %v509
        %542 = vst [vmem:[%s137 + $0x90] sm:$0xff] %v510
        %543 = vst [vmem:[%s137 + $0x98] sm:$0xff] %v511
        %544 = vst [vmem:[%s137 + $0xa0] sm:$0xff] %v512
        %545 = vst [vmem:[%s137 + $0xa8] sm:$0xff] %v513
        %546 = vst [vmem:[%s137 + $0xb0] sm:$0xff] %v514
        %547 = vst [vmem:[%s137 + $0xb8] sm:$0xff] %v515
        %548 = vst [vmem:[%s137 + $0xc0] sm:$0xff] %v516
        %549 = vst [vmem:[%s137 + $0xc8] sm:$0xff] %v517
        %550 = vst [vmem:[%s137 + $0xd0] sm:$0xff] %v518
        %551 = vst [vmem:[%s137 + $0xd8] sm:$0xff] %v519
        %552 = vst [vmem:[%s137 + $0xe0] sm:$0xff] %v520
        %553 = vst [vmem:[%s137 + $0xe8] sm:$0xff] %v521
        %554 = vst [vmem:[%s137 + $0xf0] sm:$0xff] %v522
        %555 = vst [vmem:[%s137 + $0xf8] sm:$0xff] %v523
        %s556 = sand.u32 %s71, 1
        %s557 = scalar_lea.sflag [#allocation3], %s556
        %s558 = sand.u32 %s71, 1
        %s559 = smul.addr %s558, 256
        %s560 = scalar_lea.vmem [#allocation2], %s559
        // Predicated region
        $region29: #{tpu_custom_call.1} parent=27 // pred_check
          %p561 = pneg %p81
        $region30: #{tpu_custom_call.1} parent=27 // pred_check_branch
          %563 = sbr.rel (%p561) target = $region32
        $region31: #{tpu_custom_call.1} parent=27 // pred_region
          %s564 = smul.u32 32, %s16
          %s566 = ssub.s32 4096, 4096
          %567 = vsyncadd %s557, %s566
          %s568 = smul.addr %s564, 128
          %s569 = scalar_lea.hbm %s2, %s568
          %s570 = sshll.u32 %s560, 4
          %s571 = int_to_ptr.vmem [resolvable:$true] %s570
          %576 = dma.vmem_to_hbm [thread:$0]  %s571, 4096, %s569, %s557, 128, 128, 8
        $region32: #{tpu_custom_call.1} parent=27 // pred_fallthru
          _
      $region28: #{tpu_custom_call.1} parent=5 // pred_fallthru
        _
      %p577 = scmp.le.s32.totalorder 2, %s11
      // Predicated region
      $region33: #{tpu_custom_call.1} parent=5 // pred_check
        %p578 = pneg %p577
      $region34: #{tpu_custom_call.1} parent=5 // pred_check_branch
        %580 = sbr.rel (%p578) target = $region36
      $region35: #{tpu_custom_call.1} parent=5 // pred_region
        %s581 = ssub.s32 %s11, 2
        // Predicated region
        $region37: #{tpu_custom_call.1} parent=35 // pred_check
          %p582 = pneg %p87
        $region38: #{tpu_custom_call.1} parent=35 // pred_check_branch
          %584 = sbr.rel (%p582) target = $region40
        $region39: #{tpu_custom_call.1} parent=35 // pred_region
          %s585 = sand.u32 %s72, 1
          %s586 = scalar_lea.sflag [#allocation3], %s585
          %s587 = sand.u32 %s72, 1
          %s588 = smul.addr %s587, 256
          %s589 = scalar_lea.vmem [#allocation2], %s588
          %590 = dma.done %s586, 4096
        $region40: #{tpu_custom_call.1} parent=35 // pred_fallthru
          _
      $region36: #{tpu_custom_call.1} parent=5 // pred_fallthru
        _
    $region6: #{tpu_custom_call.1} parent=1 // loop_footer
      %s15 = sadd.s32 1, %s11
    $region7: #{tpu_custom_call.1} parent=1 // loop_footer_branch
      %10 = sbr.rel target = $region3
    $region8: #{tpu_custom_call.1} parent=1 // loop_exit
      _
    %591 = vsyncpa [#allocation3], 1
    %s592 = scalar_lea.sflag [#allocation3], 1
    %593 = vsyncpa %s592, 1

</llo_original>
